<compile_context>
chip_gen: v7x
topology: tpu7x:2x2x1
jax: 0.10.0
libtpu: 0.0.40
codegen_flags: <defaults>
</compile_context>

<pallas_src>
import jax
import jax.numpy as jnp
from jax.experimental import pallas as pl
from jax.experimental.pallas import tpu as pltpu


def mlp_kernel(x_ref, w1_ref, b1_ref, w2_ref, b2_ref, w3_ref, b3_ref, o_ref):
    x = x_ref[...]                                            # (1, TB) f32

    # fc1 (K=1 contraction): broadcast multiply-add on the VPU.
    h1 = jnp.tanh(w1_ref[...] * x + b1_ref[...])              # (10,1)*(1,TB) -> (10, TB)

    # fc2: MXU, N = batch (lane-dense output).
    h2 = jnp.dot(w2_ref[...], h1, preferred_element_type=jnp.float32)
    h2 = jnp.tanh(h2 + b2_ref[...])                           # (20, TB)

    # fc3 (no activation).
    h3 = jnp.dot(w3_ref[...], h2, preferred_element_type=jnp.float32)
    o_ref[...] = (h3 + b3_ref[...]).astype(o_ref.dtype)       # (2, TB)


def nonmonotonic_mlp(x, params, *, block_b=16384):
    """x: (batch, 1) float32. Returns (batch, 2) float32.

    Weights are stored in PyTorch layout (out_features, in_features);
    biases as (out_features, 1) columns so they broadcast over the lane
    (batch) axis inside the kernel.
    """
    w1, b1, w2, b2, w3, b3 = params
    batch = x.shape[0]

    # Batch sits on the lane axis -> tile width must be a multiple of 128.
    # Clamp the tile to the (128-padded) batch so small inputs run in ONE
    # grid step; large inputs use big tiles to amortize ~0.35us/step overhead.
    tb = min(block_b, 128 * pl.cdiv(batch, 128))
    batch_pad = tb * pl.cdiv(batch, tb)

    x_t = x.reshape(1, batch)                 # (B,1) -> (1,B): pure reshape
    if batch_pad != batch:
        x_t = jnp.pad(x_t, ((0, 0), (0, batch_pad - batch)))

    # Constant index_map => block index never changes => DMA'd once, resident.
    resident = lambda a: pl.BlockSpec(a.shape, lambda i: (0, 0))

    out_t = pl.pallas_call(
        mlp_kernel,
        out_shape=jax.ShapeDtypeStruct((2, batch_pad), jnp.float32),
        grid=(batch_pad // tb,),
        in_specs=[
            pl.BlockSpec((1, tb), lambda i: (0, i)),     # x, pipelined over batch
            resident(w1), resident(b1),
            resident(w2), resident(b2),
            resident(w3), resident(b3),
        ],
        out_specs=pl.BlockSpec((2, tb), lambda i: (0, i)),
        compiler_params=pltpu.CompilerParams(
            dimension_semantics=("parallel",),           # 2x on v7x's two TCs
        ),
        cost_estimate=pl.CostEstimate(
            flops=2 * (10 + 10 * 20 + 20 * 2) * batch_pad,
            transcendentals=30 * batch_pad,
            bytes_accessed=12 * batch_pad,
        ),
    )(x_t, w1, b1, w2, b2, w3, b3)

    # Lane-dense kernel output is (2, B); present PyTorch's (B, 2) outside.
    return out_t[:, :batch].T


def init_params(key):
    """Deterministic init matching PyTorch nn.Linear shapes:
    weight (out_features, in_features), bias stored as (out_features, 1)."""
    def linear(key, fan_in, fan_out):
        kw, kb = jax.random.split(key)
        bound = 1.0 / jnp.sqrt(fan_in)
        w = jax.random.uniform(kw, (fan_out, fan_in), jnp.float32, -bound, bound)
        b = jax.random.uniform(kb, (fan_out, 1), jnp.float32, -bound, bound)
        return w, b

    k1, k2, k3 = jax.random.split(key, 3)
    w1, b1 = linear(k1, 1, 10)
    w2, b2 = linear(k2, 10, 20)
    w3, b3 = linear(k3, 20, 2)
    return w1, b1, w2, b2, w3, b3


def reference(x, params):
    """Pure-JAX reference matching PyTorch: y = x @ W.T + b."""
    w1, b1, w2, b2, w3, b3 = params
    h = jnp.tanh(x @ w1.T + b1.T)
    h = jnp.tanh(h @ w2.T + b2.T)
    return h @ w3.T + b3.T


if __name__ == "__main__":
    key = jax.random.PRNGKey(0)
    kp, kx, kx2 = jax.random.split(key, 3)

    params = init_params(kp)

    # Small test case (batch of 8 scalars), as in the module spec.
    x = jax.random.normal(kx, (8, 1), jnp.float32)
    out = jax.block_until_ready(nonmonotonic_mlp(x, params))
    ref = reference(x, params)
    assert out.shape == (8, 2), out.shape
    assert jnp.allclose(out, ref, atol=1e-5, rtol=1e-5), (out, ref)

    # Also exercise the padding path and a multi-step pipelined grid.
    x2 = jax.random.normal(kx2, (1111, 1), jnp.float32)
    out2 = jax.block_until_ready(nonmonotonic_mlp(x2, params))
    ref2 = reference(x2, params)
    assert out2.shape == (1111, 2), out2.shape
    assert jnp.allclose(out2, ref2, atol=1e-5, rtol=1e-5)

    x3 = jax.random.normal(kx2, (40000, 1), jnp.float32)
    out3 = jax.block_until_ready(nonmonotonic_mlp(x3, params))
    ref3 = reference(x3, params)
    assert jnp.allclose(out3, ref3, atol=1e-5, rtol=1e-5)

    print("KERNEL_OK")
</pallas_src>

<mosaic_0001>
module attributes {stable_mosaic.version = 11 : i64} {
  func.func @mlp_kernel(%arg0: i32, %arg1: memref<1x128xf32, #tpu.memory_space<vmem>>, %arg2: memref<10x1xf32, #tpu.memory_space<vmem>>, %arg3: memref<10x1xf32, #tpu.memory_space<vmem>>, %arg4: memref<20x10xf32, #tpu.memory_space<vmem>>, %arg5: memref<20x1xf32, #tpu.memory_space<vmem>>, %arg6: memref<2x20xf32, #tpu.memory_space<vmem>>, %arg7: memref<2x1xf32, #tpu.memory_space<vmem>>, %arg8: memref<2x128xf32, #tpu.memory_space<vmem>>) attributes {dimension_semantics = [#tpu.dimension_semantics<parallel>], iteration_bounds = array<i64: 1>, scalar_prefetch = 0 : i64, scratch_operands = 0 : i64, tpu.core_type = #tpu.core_type<tc>, window_params = [{transform_indices = @transform_0, window_bounds = array<i64: 1, 128>}, {pipeline_mode = #tpu.pipeline_mode<synchronous>, transform_indices = @transform_1, window_bounds = array<i64: 10, 1>}, {pipeline_mode = #tpu.pipeline_mode<synchronous>, transform_indices = @transform_2, window_bounds = array<i64: 10, 1>}, {pipeline_mode = #tpu.pipeline_mode<synchronous>, transform_indices = @transform_3, window_bounds = array<i64: 20, 10>}, {pipeline_mode = #tpu.pipeline_mode<synchronous>, transform_indices = @transform_4, window_bounds = array<i64: 20, 1>}, {pipeline_mode = #tpu.pipeline_mode<synchronous>, transform_indices = @transform_5, window_bounds = array<i64: 2, 20>}, {pipeline_mode = #tpu.pipeline_mode<synchronous>, transform_indices = @transform_6, window_bounds = array<i64: 2, 1>}, {transform_indices = @transform_7, window_bounds = array<i64: 2, 128>}]} {
    %c0 = arith.constant 0 : index
    %c0_0 = arith.constant 0 : index
    %0 = vector.load %arg1[%c0, %c0_0] : memref<1x128xf32, #tpu.memory_space<vmem>>, vector<1x128xf32>
    %c0_1 = arith.constant 0 : index
    %c0_2 = arith.constant 0 : index
    %1 = vector.load %arg2[%c0_1, %c0_2] : memref<10x1xf32, #tpu.memory_space<vmem>>, vector<10x1xf32>
    %2 = vector.broadcast %1 : vector<10x1xf32> to vector<10x128xf32>
    %3 = vector.broadcast %0 : vector<1x128xf32> to vector<10x128xf32>
    %4 = arith.mulf %2, %3 : vector<10x128xf32>
    %c0_3 = arith.constant 0 : index
    %c0_4 = arith.constant 0 : index
    %5 = vector.load %arg3[%c0_3, %c0_4] : memref<10x1xf32, #tpu.memory_space<vmem>>, vector<10x1xf32>
    %6 = vector.broadcast %5 : vector<10x1xf32> to vector<10x128xf32>
    %7 = arith.addf %4, %6 : vector<10x128xf32>
    %8 = math.tanh %7 : vector<10x128xf32>
    %c0_5 = arith.constant 0 : index
    %c0_6 = arith.constant 0 : index
    %9 = vector.load %arg4[%c0_5, %c0_6] : memref<20x10xf32, #tpu.memory_space<vmem>>, vector<20x10xf32>
    %cst = arith.constant dense<0.000000e+00> : vector<20x128xf32>
    %10 = tpu.matmul %9, %8, %cst {dimension_numbers = #tpu.dot_dimension_numbers<[1], [0], [0], [1], [0, 0, 1, 1], [], []>} : vector<20x10xf32>, vector<10x128xf32>, vector<20x128xf32> -> vector<20x128xf32>
    %c0_7 = arith.constant 0 : index
    %c0_8 = arith.constant 0 : index
    %11 = vector.load %arg5[%c0_7, %c0_8] : memref<20x1xf32, #tpu.memory_space<vmem>>, vector<20x1xf32>
    %12 = vector.broadcast %11 : vector<20x1xf32> to vector<20x128xf32>
    %13 = arith.addf %10, %12 : vector<20x128xf32>
    %14 = math.tanh %13 : vector<20x128xf32>
    %c0_9 = arith.constant 0 : index
    %c0_10 = arith.constant 0 : index
    %15 = vector.load %arg6[%c0_9, %c0_10] : memref<2x20xf32, #tpu.memory_space<vmem>>, vector<2x20xf32>
    %cst_11 = arith.constant dense<0.000000e+00> : vector<2x128xf32>
    %16 = tpu.matmul %15, %14, %cst_11 {dimension_numbers = #tpu.dot_dimension_numbers<[1], [0], [0], [1], [0, 0, 1, 1], [], []>} : vector<2x20xf32>, vector<20x128xf32>, vector<2x128xf32> -> vector<2x128xf32>
    %c0_12 = arith.constant 0 : index
    %c0_13 = arith.constant 0 : index
    %17 = vector.load %arg7[%c0_12, %c0_13] : memref<2x1xf32, #tpu.memory_space<vmem>>, vector<2x1xf32>
    %18 = vector.broadcast %17 : vector<2x1xf32> to vector<2x128xf32>
    %19 = arith.addf %16, %18 : vector<2x128xf32>
    %c0_14 = arith.constant 0 : index
    %c0_15 = arith.constant 0 : index
    %20 = vector.load %arg8[%c0_14, %c0_15] : memref<2x128xf32, #tpu.memory_space<vmem>>, vector<2x128xf32>
    tpu.vector_store %arg8[%c0_14, %c0_15], %19 {strides = array<i32>} : memref<2x128xf32, #tpu.memory_space<vmem>>, vector<2x128xf32>,
    return
  }
  func.func @transform_0(%arg0: i32) -> (i32, i32) {
    %c0_i32 = arith.constant 0 : i32
    %c0_i32_0 = arith.constant 0 : i32
    return %c0_i32, %arg0 : i32, i32
  }
  func.func @transform_1(%arg0: i32) -> (i32, i32) {
    %c0_i32 = arith.constant 0 : i32
    %c0_i32_0 = arith.constant 0 : i32
    %c0_i32_1 = arith.constant 0 : i32
    return %c0_i32, %c0_i32_0 : i32, i32
  }
  func.func @transform_2(%arg0: i32) -> (i32, i32) {
    %c0_i32 = arith.constant 0 : i32
    %c0_i32_0 = arith.constant 0 : i32
    %c0_i32_1 = arith.constant 0 : i32
    return %c0_i32, %c0_i32_0 : i32, i32
  }
  func.func @transform_3(%arg0: i32) -> (i32, i32) {
    %c0_i32 = arith.constant 0 : i32
    %c0_i32_0 = arith.constant 0 : i32
    %c0_i32_1 = arith.constant 0 : i32
    return %c0_i32, %c0_i32_0 : i32, i32
  }
  func.func @transform_4(%arg0: i32) -> (i32, i32) {
    %c0_i32 = arith.constant 0 : i32
    %c0_i32_0 = arith.constant 0 : i32
    %c0_i32_1 = arith.constant 0 : i32
    return %c0_i32, %c0_i32_0 : i32, i32
  }
  func.func @transform_5(%arg0: i32) -> (i32, i32) {
    %c0_i32 = arith.constant 0 : i32
    %c0_i32_0 = arith.constant 0 : i32
    %c0_i32_1 = arith.constant 0 : i32
    return %c0_i32, %c0_i32_0 : i32, i32
  }
  func.func @transform_6(%arg0: i32) -> (i32, i32) {
    %c0_i32 = arith.constant 0 : i32
    %c0_i32_0 = arith.constant 0 : i32
    %c0_i32_1 = arith.constant 0 : i32
    return %c0_i32, %c0_i32_0 : i32, i32
  }
  func.func @transform_7(%arg0: i32) -> (i32, i32) {
    %c0_i32 = arith.constant 0 : i32
    %c0_i32_0 = arith.constant 0 : i32
    return %c0_i32, %arg0 : i32, i32
  }
}

</mosaic_0001>

<llo_original>
// kernel: tpu_custom_call.1
$region0: #{tpu_custom_call.1}
  #allocation0 [shape = 'u32[]', space=smem, size = 0x4, offset = 0x4, fixed_abs, tag = 'smem constant byte address 0x4 - core index']
  #allocation1 [shape = 'u32[144,128]{1,0:T(1,128)}', space=vmem, size = 0x12000, scoped, tag = 'internal scratch']
  %s0 = inlined_call_operand.vmem [shape: f32[1,128], index: 0, kind: input, shape index: {}]
  %s1 = inlined_call_operand.vmem [shape: f32[10,1], index: 1, kind: input, shape index: {}]
  %s2 = inlined_call_operand.vmem [shape: f32[10,1], index: 2, kind: input, shape index: {}]
  %s3 = inlined_call_operand.vmem [shape: f32[20,10], index: 3, kind: input, shape index: {}]
  %s4 = inlined_call_operand.vmem [shape: f32[20,1], index: 4, kind: input, shape index: {}]
  %s5 = inlined_call_operand.vmem [shape: f32[2,20], index: 5, kind: input, shape index: {}]
  %s6 = inlined_call_operand.vmem [shape: f32[2,1], index: 6, kind: input, shape index: {}]
  %s7 = inlined_call_operand.hbm [shape: f32[2,128], index: 7, kind: output, shape index: {}]
  %s8 = sld [smem:[#allocation0]]
  $region38: #{tpu_custom_call.1} parent=0
    _
  %s10 = ssub.s32 1, %s8
  %s11 = scalar_select 0, %s10, %s8
  $region1: #{tpu_custom_call.1} parent=0
    #allocation2 [shape = 'u8[1024]{0}', space=vmem, size = 0x400, scoped, tag = 'output window, operand 0, single buffered']
    #allocation3 [shape = 's32[1]{0}', space=sflag, size = 0x4, scoped, tag = 'scoped memory for tpu_custom_call.1']
    %12 = vsyncpa [#allocation3], 0
    // Predicated region
    $region2: #{tpu_custom_call.1} parent=1 // pred_check
      _
    $region3: #{tpu_custom_call.1} parent=1 // pred_check_branch
      %14 = sbr.rel (0) target = $region5
    $region4: #{tpu_custom_call.1} parent=1 // pred_region
      _
    $region5: #{tpu_custom_call.1} parent=1 // pred_fallthru
      _
    // Predicated region
    $region6: #{tpu_custom_call.1} parent=1 // pred_check
      _
    $region7: #{tpu_custom_call.1} parent=1 // pred_check_branch
      %16 = sbr.rel (0) target = $region9
    $region8: #{tpu_custom_call.1} parent=1 // pred_region
      _
    $region9: #{tpu_custom_call.1} parent=1 // pred_fallthru
      _
    // Predicated region
    $region10: #{tpu_custom_call.1} parent=1 // pred_check
      _
    $region11: #{tpu_custom_call.1} parent=1 // pred_check_branch
      %18 = sbr.rel (0) target = $region13
    $region12: #{tpu_custom_call.1} parent=1 // pred_region
      _
    $region13: #{tpu_custom_call.1} parent=1 // pred_fallthru
      _
    // Predicated region
    $region14: #{tpu_custom_call.1} parent=1 // pred_check
      _
    $region15: #{tpu_custom_call.1} parent=1 // pred_check_branch
      %20 = sbr.rel (0) target = $region17
    $region16: #{tpu_custom_call.1} parent=1 // pred_region
      _
    $region17: #{tpu_custom_call.1} parent=1 // pred_fallthru
      _
    // Predicated region
    $region18: #{tpu_custom_call.1} parent=1 // pred_check
      _
    $region19: #{tpu_custom_call.1} parent=1 // pred_check_branch
      %22 = sbr.rel (0) target = $region21
    $region20: #{tpu_custom_call.1} parent=1 // pred_region
      _
    $region21: #{tpu_custom_call.1} parent=1 // pred_fallthru
      _
    // Predicated region
    $region22: #{tpu_custom_call.1} parent=1 // pred_check
      _
    $region23: #{tpu_custom_call.1} parent=1 // pred_check_branch
      %24 = sbr.rel (0) target = $region25
    $region24: #{tpu_custom_call.1} parent=1 // pred_region
      _
    $region25: #{tpu_custom_call.1} parent=1 // pred_fallthru
      _
    // Predicated region
    $region26: #{tpu_custom_call.1} parent=1 // pred_check
      _
    $region27: #{tpu_custom_call.1} parent=1 // pred_check_branch
      %26 = sbr.rel (0) target = $region29
    $region28: #{tpu_custom_call.1} parent=1 // pred_region
      _
    $region29: #{tpu_custom_call.1} parent=1 // pred_fallthru
      _
    %v27 = vld [vmem:[%s0] sm:$0x1]
    %v28 = vld [vmem:[%s1] sm:$0xff]
    %v29 = vld [vmem:[%s1 + $0x8] sm:$0x3]
    %31 = vset.pattern.permute.xlu0 0
    %32 = vperm.xlu0 %31, %v28
    %v33 = vpop.permute.xlu0 %32
    %36 = vset.pattern.permute.xlu0 0
    %37 = vperm.xlu0 %36, %v29
    %v38 = vpop.permute.xlu0 %37
    %v41 = vlaneseq
    %v42 = vshrl.u32 %v41, 7
    %v43 = vsub.s32 0, %v42
    %v44 = vrot.slane %v27, %v43
    %v46 = vmul.f32 %v33, %v44
    %v47 = vmul.f32 %v38, %v44
    %v48 = vld [vmem:[%s2] sm:$0xff]
    %v49 = vld [vmem:[%s2 + $0x8] sm:$0x3]
    %51 = vset.pattern.permute.xlu0 0
    %52 = vperm.xlu0 %51, %v48
    %v53 = vpop.permute.xlu0 %52
    %56 = vset.pattern.permute.xlu0 0
    %57 = vperm.xlu0 %56, %v49
    %v58 = vpop.permute.xlu0 %57
    %v60 = vadd.f32 %v46, %v53
    %v61 = vadd.f32 %v47, %v58
    %v62 = vtanh.pop %v60
    %v63 = vtanh.pop %v61
    %v64 = vld [vmem:[%s3] sm:$0xff]
    %v65 = vld [vmem:[%s3 + $0x8] sm:$0xff]
    %v66 = vld [vmem:[%s3 + $0x10] sm:$0xf]
    %v67 = vld [vmem:[%s4] sm:$0xff]
    %v68 = vld [vmem:[%s4 + $0x8] sm:$0xff]
    %v69 = vld [vmem:[%s4 + $0x10] sm:$0xf]
    %71 = vset.pattern.permute.xlu0 0
    %72 = vperm.xlu0 %71, %v67
    %v73 = vpop.permute.xlu0 %72
    %76 = vset.pattern.permute.xlu0 0
    %77 = vperm.xlu0 %76, %v68
    %v78 = vpop.permute.xlu0 %77
    %81 = vset.pattern.permute.xlu0 0
    %82 = vperm.xlu0 %81, %v69
    %v83 = vpop.permute.xlu0 %82
    %vm85 = vcmask 80896
    %v87 = vsel %vm85, %v64, 0
    %v90 = vsel %vm85, %v65, 0
    %v93 = vsel %vm85, %v66, 0
    %vm95 = vcmask 1041408
    %v97 = vsel %vm95, %v63, 0
    %99 = vmatprep.subr.mxu0 0.0
    %100 = vmatpush1.msra.mxu0 %v62
    %101 = vmatprep.subr.mxu0 0.0
    %102 = vmatpush1.msra.mxu0 %v97
    %103 = vmatprep.subr.mxu0 0.0
    %104 = vmatpush1.msra.mxu0 0.0
    %105 = vmatprep.subr.mxu0 0.0
    %106 = vmatpush1.msra.mxu0 0.0
    %107 = vmatprep.subr.mxu0 0.0
    %108 = vmatpush1.msra.mxu0 0.0
    %109 = vmatprep.subr.mxu0 0.0
    %110 = vmatpush1.msra.mxu0 0.0
    %111 = vmatprep.subr.mxu0 0.0
    %112 = vmatpush1.msra.mxu0 0.0
    %113 = vmatprep.subr.mxu0 0.0
    %114 = vmatpush1.msra.mxu0 0.0
    %115 = vmatprep.subr.mxu0 0.0
    %116 = vmatpush1.msra.mxu0 0.0
    %117 = vmatprep.subr.mxu0 0.0
    %118 = vmatpush1.msra.mxu0 0.0
    %119 = vmatprep.subr.mxu0 0.0
    %120 = vmatpush1.msra.mxu0 0.0
    %121 = vmatprep.subr.mxu0 0.0
    %122 = vmatpush1.msra.mxu0 0.0
    %123 = vmatprep.subr.mxu0 0.0
    %124 = vmatpush1.msra.mxu0 0.0
    %125 = vmatprep.subr.mxu0 0.0
    %126 = vmatpush1.msra.mxu0 0.0
    %127 = vmatprep.subr.mxu0 0.0
    %128 = vmatpush1.msra.mxu0 0.0
    %129 = vmatprep.subr.mxu0 0.0
    %130 = vmatpush1.msra.mxu0 0.0
    %131 = vmatprep.subr.mxu0 0.0
    %132 = vmatpush1.msra.mxu0 0.0
    %133 = vmatprep.subr.mxu0 0.0
    %134 = vmatpush1.msra.mxu0 0.0
    %135 = vmatprep.subr.mxu0 0.0
    %136 = vmatpush1.msra.mxu0 0.0
    %137 = vmatprep.subr.mxu0 0.0
    %138 = vmatpush1.msra.mxu0 0.0
    %139 = vmatprep.subr.mxu0 0.0
    %140 = vmatpush1.msra.mxu0 0.0
    %141 = vmatprep.subr.mxu0 0.0
    %142 = vmatpush1.msra.mxu0 0.0
    %143 = vmatprep.subr.mxu0 0.0
    %144 = vmatpush1.msra.mxu0 0.0
    %145 = vmatprep.subr.mxu0 0.0
    %146 = vmatpush1.msra.mxu0 0.0
    %147 = vmatprep.subr.mxu0 0.0
    %148 = vmatpush1.msra.mxu0 0.0
    %149 = vmatprep.subr.mxu0 0.0
    %150 = vmatpush1.msra.mxu0 0.0
    %151 = vmatprep.subr.mxu0 0.0
    %152 = vmatpush1.msra.mxu0 0.0
    %153 = vmatprep.subr.mxu0 0.0
    %154 = vmatpush1.msra.mxu0 0.0
    %155 = vmatprep.subr.mxu0 0.0
    %156 = vmatpush1.msra.mxu0 0.0
    %157 = vmatprep.subr.mxu0 0.0
    %158 = vmatpush1.msra.mxu0 0.0
    %159 = vmatprep.subr.mxu0 0.0
    %160 = vmatpush1.msra.mxu0 0.0
    %161 = vmatprep.subr.mxu0 0.0
    %162 = vmatpush1.msra.mxu0 0.0
    %163 = vmatprep.mubr.f32.mxu0 0.0
    %164 = vmatmul.mubr.f32.gmra.mrb[0].mxu0 %v87
    %v165 = vpop.f32.mrb[0].mxu0
    %v166 = vadd.f32 %v73, %v165
    %v167 = vpop.f32.mrb[0].mxu0
    %168 = vmatprep.mubr.f32.mxu0 0.0
    %169 = vmatmul.mubr.f32.gmra.mrb[0].mxu0 %v90
    %v170 = vpop.f32.mrb[0].mxu0
    %v171 = vadd.f32 %v78, %v170
    %v172 = vpop.f32.mrb[0].mxu0
    %173 = vmatprep.mubr.f32.mxu0 0.0
    %174 = vmatmul.mubr.f32.gmra.mrb[0].mxu0 %v93
    %v175 = vpop.f32.mrb[0].mxu0
    %v176 = vadd.f32 %v83, %v175
    %v177 = vpop.f32.mrb[0].mxu0
    %178 = vdwg.mxu0
    %v179 = vtanh.pop %v166
    %v180 = vtanh.pop %v171
    %v181 = vtanh.pop %v176
    %v182 = vld [vmem:[%s5] sm:$0x3]
    %v183 = vld [vmem:[%s6] sm:$0x3]
    %185 = vset.pattern.permute.xlu0 0
    %186 = vperm.xlu0 %185, %v183
    %v187 = vpop.permute.xlu0 %186
    %vm189 = vcmask 162816
    %v191 = vsel %vm189, %v182, 0
    %vm193 = vcmask 1043456
    %v195 = vsel %vm193, %v181, 0
    %197 = vmatprep.subr.mxu0 0.0
    %198 = vmatpush1.msra.mxu0 %v179
    %199 = vmatprep.subr.mxu0 0.0
    %200 = vmatpush1.msra.mxu0 %v180
    %201 = vmatprep.subr.mxu0 0.0
    %202 = vmatpush1.msra.mxu0 %v195
    %203 = vmatprep.subr.mxu0 0.0
    %204 = vmatpush1.msra.mxu0 0.0
    %205 = vmatprep.subr.mxu0 0.0
    %206 = vmatpush1.msra.mxu0 0.0
    %207 = vmatprep.subr.mxu0 0.0
    %208 = vmatpush1.msra.mxu0 0.0
    %209 = vmatprep.subr.mxu0 0.0
    %210 = vmatpush1.msra.mxu0 0.0
    %211 = vmatprep.subr.mxu0 0.0
    %212 = vmatpush1.msra.mxu0 0.0
    %213 = vmatprep.subr.mxu0 0.0
    %214 = vmatpush1.msra.mxu0 0.0
    %215 = vmatprep.subr.mxu0 0.0
    %216 = vmatpush1.msra.mxu0 0.0
    %217 = vmatprep.subr.mxu0 0.0
    %218 = vmatpush1.msra.mxu0 0.0
    %219 = vmatprep.subr.mxu0 0.0
    %220 = vmatpush1.msra.mxu0 0.0
    %221 = vmatprep.subr.mxu0 0.0
    %222 = vmatpush1.msra.mxu0 0.0
    %223 = vmatprep.subr.mxu0 0.0
    %224 = vmatpush1.msra.mxu0 0.0
    %225 = vmatprep.subr.mxu0 0.0
    %226 = vmatpush1.msra.mxu0 0.0
    %227 = vmatprep.subr.mxu0 0.0
    %228 = vmatpush1.msra.mxu0 0.0
    %229 = vmatprep.subr.mxu0 0.0
    %230 = vmatpush1.msra.mxu0 0.0
    %231 = vmatprep.subr.mxu0 0.0
    %232 = vmatpush1.msra.mxu0 0.0
    %233 = vmatprep.subr.mxu0 0.0
    %234 = vmatpush1.msra.mxu0 0.0
    %235 = vmatprep.subr.mxu0 0.0
    %236 = vmatpush1.msra.mxu0 0.0
    %237 = vmatprep.subr.mxu0 0.0
    %238 = vmatpush1.msra.mxu0 0.0
    %239 = vmatprep.subr.mxu0 0.0
    %240 = vmatpush1.msra.mxu0 0.0
    %241 = vmatprep.subr.mxu0 0.0
    %242 = vmatpush1.msra.mxu0 0.0
    %243 = vmatprep.subr.mxu0 0.0
    %244 = vmatpush1.msra.mxu0 0.0
    %245 = vmatprep.subr.mxu0 0.0
    %246 = vmatpush1.msra.mxu0 0.0
    %247 = vmatprep.subr.mxu0 0.0
    %248 = vmatpush1.msra.mxu0 0.0
    %249 = vmatprep.subr.mxu0 0.0
    %250 = vmatpush1.msra.mxu0 0.0
    %251 = vmatprep.subr.mxu0 0.0
    %252 = vmatpush1.msra.mxu0 0.0
    %253 = vmatprep.subr.mxu0 0.0
    %254 = vmatpush1.msra.mxu0 0.0
    %255 = vmatprep.subr.mxu0 0.0
    %256 = vmatpush1.msra.mxu0 0.0
    %257 = vmatprep.subr.mxu0 0.0
    %258 = vmatpush1.msra.mxu0 0.0
    %259 = vmatprep.subr.mxu0 0.0
    %260 = vmatpush1.msra.mxu0 0.0
    %261 = vmatprep.mubr.f32.mxu0 0.0
    %262 = vmatmul.mubr.f32.gmra.mrb[0].mxu0 %v191
    %v263 = vpop.f32.mrb[0].mxu0
    %v264 = vadd.f32 %v187, %v263
    %v265 = vpop.f32.mrb[0].mxu0
    %266 = vdwg.mxu0
    %267 = vst [vmem:[#allocation2] sm:$0x3] %v264
    // Predicated region
    $region30: #{tpu_custom_call.1} parent=1 // pred_check
      _
    $region31: #{tpu_custom_call.1} parent=1 // pred_check_branch
      %269 = sbr.rel (0) target = $region33
    $region32: #{tpu_custom_call.1} parent=1 // pred_region
      %s271 = ssub.s32 32, 32
      %272 = vsyncadd [#allocation3], %s271
      %s274 = sshll.u32 [#allocation2], 4
      %s275 = int_to_ptr.vmem [resolvable:$true] %s274
      %277 = dma.vmem_to_hbm [thread:$0]  %s275, 32, %s7, [#allocation3]
    $region33: #{tpu_custom_call.1} parent=1 // pred_fallthru
      _
    // Predicated region
    $region34: #{tpu_custom_call.1} parent=1 // pred_check
      _
    $region35: #{tpu_custom_call.1} parent=1 // pred_check_branch
      %279 = sbr.rel (0) target = $region37
    $region36: #{tpu_custom_call.1} parent=1 // pred_region
      %280 = dma.done [#allocation3], 32
    $region37: #{tpu_custom_call.1} parent=1 // pred_fallthru
      _
    %281 = vsyncpa [#allocation3], 1

</llo_original>
